<compile_context>
chip_gen: v5e
topology: v5e:2x2
jax: 0.10.0
libtpu: 0.0.40
codegen_flags: <defaults>
</compile_context>

<pallas_src>
import functools

import jax
import jax.numpy as jnp
from jax.experimental import pallas as pl
from jax.experimental.pallas import tpu as pltpu


def _residual_scale_kernel(scale_ref, recon_ref, inp_ref, o_ref):
    # scale_ref: (1, 1) f32 scalar in SMEM
    # recon_ref / inp_ref / o_ref: (TH, Wp) VMEM tiles
    scale = scale_ref[0, 0]
    o_ref[...] = ((recon_ref[...] + inp_ref[...]) * scale).astype(o_ref.dtype)


def _scale_only_kernel(scale_ref, recon_ref, o_ref):
    scale = scale_ref[0, 0]
    o_ref[...] = (recon_ref[...] * scale).astype(o_ref.dtype)


def _round_up(x, m):
    return ((x + m - 1) // m) * m


def _pick_row_tile(hp, wp, n_streams):
    """Largest multiple-of-8 row tile fitting a conservative VMEM budget.

    Each streamed array is double-buffered by the BlockSpec pipeline, so the
    VMEM footprint is ~ 2 * n_streams * TH * Wp * 4 bytes.  The 40 MiB budget
    is sized for v7x (64 MiB physical VMEM / TC); v5e & v6e have more headroom.
    """
    bytes_per_row = wp * 4  # f32
    budget_bytes = 40 * 1024 * 1024
    th = budget_bytes // (2 * n_streams * bytes_per_row)
    th = max(8, min(int(th), 1024, hp))
    th = (th // 8) * 8
    # Keep at least 2 grid blocks so v7x's two TensorCores both get work.
    if hp >= 16 and 2 * th > hp:
        th = _round_up(pl.cdiv(hp, 2), 8)
    return th


def post_process_rss(rss_output, targets, extra_params, *, residual_rss=True):
    """JAX/Pallas equivalent of PostProcessRSS.forward.

    rss_output : (1, H, W) float32  (leading batch dim must be 1)
    targets    : dict with 'rss_targets' (H, W) and 'rss_inputs' (H, W)
    extra_params: dict with 'img_scales' scalar
    returns    : {'rss_recons': (H, W)}
    """
    if rss_output.shape[0] > 1:
        raise NotImplementedError("Only one at a time for now.")

    rss_target = targets["rss_targets"]
    rss_recon = jnp.squeeze(rss_output)  # drop size-1 dims (batch)
    assert rss_recon.shape == rss_target.shape, (
        f"{rss_recon.shape} vs {rss_target.shape}"
    )

    H, W = rss_recon.shape
    Hp = _round_up(H, 8)      # row-tileable
    Wp = _round_up(W, 128)    # lane-dense stores

    needs_pad = (Hp, Wp) != (H, W)

    def _pad(x):
        if not needs_pad:
            return x
        return jnp.pad(x, ((0, Hp - H), (0, Wp - W)))

    rss_recon_p = _pad(rss_recon)

    n_streams = 3 if residual_rss else 2
    TH = _pick_row_tile(Hp, Wp, n_streams)
    grid = (pl.cdiv(Hp, TH),)

    scale = jnp.asarray(extra_params["img_scales"], jnp.float32).reshape(1, 1)

    img_spec = pl.BlockSpec((TH, Wp), lambda i: (i, 0))
    scale_spec = pl.BlockSpec(memory_space=pltpu.SMEM)
    out_shape = jax.ShapeDtypeStruct((Hp, Wp), rss_recon.dtype)

    vmem_limit = max(2 * n_streams * TH * Wp * 4 + (4 << 20), 16 << 20)
    cparams = pltpu.CompilerParams(
        dimension_semantics=("parallel",),
        vmem_limit_bytes=int(vmem_limit),
    )

    if residual_rss:
        rss_inputs = targets["rss_inputs"]
        assert rss_inputs.shape == (H, W)
        recon_p = pl.pallas_call(
            _residual_scale_kernel,
            out_shape=out_shape,
            grid=grid,
            in_specs=[scale_spec, img_spec, img_spec],
            out_specs=img_spec,
            input_output_aliases={1: 0},   # alias rss_recon with the output
            compiler_params=cparams,
        )(scale, rss_recon_p, _pad(rss_inputs))
    else:
        recon_p = pl.pallas_call(
            _scale_only_kernel,
            out_shape=out_shape,
            grid=grid,
            in_specs=[scale_spec, img_spec],
            out_specs=img_spec,
            input_output_aliases={1: 0},
            compiler_params=cparams,
        )(scale, rss_recon_p)

    recon = recon_p[:H, :W] if needs_pad else recon_p
    return {"rss_recons": recon}


if __name__ == "__main__":
    key = jax.random.PRNGKey(0)
    k1, k2, k3 = jax.random.split(key, 3)

    # Module default resolution is 320; batch must be 1.
    # W=320 exercises the lane-padding path (320 -> 384), H=320 gives a
    # 2-block "parallel" grid.
    H, W = 320, 320
    rss_output = jax.random.normal(k1, (1, H, W), dtype=jnp.float32)
    rss_targets = jax.random.normal(k2, (H, W), dtype=jnp.float32)
    rss_inputs = jax.random.normal(k3, (H, W), dtype=jnp.float32)
    img_scales = jnp.float32(2.5)

    targets = {"rss_targets": rss_targets, "rss_inputs": rss_inputs}
    extra_params = {"img_scales": img_scales}

    # Residual path.
    fn = jax.jit(functools.partial(post_process_rss, residual_rss=True))
    out = fn(rss_output, targets, extra_params)
    recon = jax.block_until_ready(out["rss_recons"])
    ref = (jnp.squeeze(rss_output) + rss_inputs) * img_scales
    assert recon.shape == (H, W)
    assert jnp.allclose(recon, ref, atol=1e-6, rtol=1e-6)

    # Scale-only path.
    fn2 = jax.jit(functools.partial(post_process_rss, residual_rss=False))
    out2 = fn2(rss_output, targets, extra_params)
    recon2 = jax.block_until_ready(out2["rss_recons"])
    ref2 = jnp.squeeze(rss_output) * img_scales
    assert jnp.allclose(recon2, ref2, atol=1e-6, rtol=1e-6)

    print("KERNEL_OK")
</pallas_src>

<mosaic_0001>
module attributes {stable_mosaic.version = 11 : i64} {
  func.func @_residual_scale_kernel(%arg0: i32, %arg1: memref<1x1xf32, #tpu.memory_space<smem>>, %arg2: memref<160x384xf32, #tpu.memory_space<vmem>>, %arg3: memref<160x384xf32, #tpu.memory_space<vmem>>, %arg4: memref<160x384xf32, #tpu.memory_space<vmem>>) attributes {dimension_semantics = [#tpu.dimension_semantics<parallel>], iteration_bounds = array<i64: 2>, scalar_prefetch = 0 : i64, scratch_operands = 0 : i64, tpu.core_type = #tpu.core_type<tc>, window_params = [{transform_indices = @transform_0, window_bounds = array<i64: 1, 1>}, {transform_indices = @transform_1, window_bounds = array<i64: 160, 384>}, {transform_indices = @transform_2, window_bounds = array<i64: 160, 384>}, {transform_indices = @transform_3, window_bounds = array<i64: 160, 384>}]} {
    %c0 = arith.constant 0 : index
    %c0_0 = arith.constant 0 : index
    %0 = memref.load %arg1[%c0, %c0_0] : memref<1x1xf32, #tpu.memory_space<smem>>
    %c0_1 = arith.constant 0 : index
    %c0_2 = arith.constant 0 : index
    %1 = vector.load %arg2[%c0_1, %c0_2] : memref<160x384xf32, #tpu.memory_space<vmem>>, vector<160x384xf32>
    %c0_3 = arith.constant 0 : index
    %c0_4 = arith.constant 0 : index
    %2 = vector.load %arg3[%c0_3, %c0_4] : memref<160x384xf32, #tpu.memory_space<vmem>>, vector<160x384xf32>
    %3 = arith.addf %1, %2 : vector<160x384xf32>
    %4 = vector.broadcast %0 : f32 to vector<160x384xf32>
    %5 = arith.mulf %3, %4 : vector<160x384xf32>
    %c0_5 = arith.constant 0 : index
    %c0_6 = arith.constant 0 : index
    %6 = vector.load %arg4[%c0_5, %c0_6] : memref<160x384xf32, #tpu.memory_space<vmem>>, vector<160x384xf32>
    tpu.vector_store %arg4[%c0_5, %c0_6], %5 {strides = array<i32>} : memref<160x384xf32, #tpu.memory_space<vmem>>, vector<160x384xf32>,
    return
  }
  func.func @transform_0(%arg0: i32) -> (i32, i32) {
    %c0_i32 = arith.constant 0 : i32
    %c0_i32_0 = arith.constant 0 : i32
    %c0_i32_1 = arith.constant 0 : i32
    return %c0_i32, %c0_i32_0 : i32, i32
  }
  func.func @transform_1(%arg0: i32) -> (i32, i32) {
    %c0_i32 = arith.constant 0 : i32
    %c0_i32_0 = arith.constant 0 : i32
    return %arg0, %c0_i32 : i32, i32
  }
  func.func @transform_2(%arg0: i32) -> (i32, i32) {
    %c0_i32 = arith.constant 0 : i32
    %c0_i32_0 = arith.constant 0 : i32
    return %arg0, %c0_i32 : i32, i32
  }
  func.func @transform_3(%arg0: i32) -> (i32, i32) {
    %c0_i32 = arith.constant 0 : i32
    %c0_i32_0 = arith.constant 0 : i32
    return %arg0, %c0_i32 : i32, i32
  }
}

</mosaic_0001>

<llo_original>
// kernel: post_process_rss.1
$region0: #{post_process_rss.1}
  #allocation0 [shape = 'u32[]', space=smem, size = 0x4, offset = 0x4, fixed_abs, tag = 'smem constant byte address 0x4 - core index']
  #allocation1 [shape = 'u32[72,128]{1,0:T(1,128)}', space=vmem, size = 0x9000, scoped, tag = 'internal scratch']
  #allocation2 [shape = 'f32[1,1]{1,0:T(1,128)S(6)}', space=smem, size = 0x200, scoped, tag = 'scoped memory for post_process_rss.1']
  %s0 = inlined_call_operand.<no memory space> [shape: f32[1,1], index: 0, kind: input, shape index: {}]
  %s1 = inlined_call_operand.vmem [shape: f32[320,384], index: 1, kind: input, shape index: {}, may-alias: {1,3}]
  %s2 = inlined_call_operand.vmem [shape: f32[320,384], index: 2, kind: input, shape index: {}]
  %s3 = inlined_call_operand.vmem [shape: f32[320,384], index: 3, kind: output, shape index: {}, may-alias: {1,3}]
  %s4 = sld [smem:[#allocation0]]
  $region45: #{post_process_rss.1} parent=0
    _
  %s6 = ssub.s32 1, %s4
  %s7 = scalar_select 0, %s6, %s4
  %8 = sst [smem:[#allocation2]] %s0
  loop: start=0, step=1, limit=4
  $region2: #{post_process_rss.1} parent=0 // loop_pre_header
    _
  $region3: #{post_process_rss.1} parent=0 // loop_header
    %s10 = sphi 0, %s14
    %p11 = scmp.ge.s32.totalorder %s10, 4
    %s18 = sphi 0, %s18
    %s20 = sphi 0, %s18
    %s21 = sphi 0, %s20
    %s35 = sphi 0, %s21
    %s41 = sphi 0, %s43
    %s44 = sphi 0, %s41
    %s45 = sphi 0, %s44
    %s61 = sphi 0, %s45
    %s67 = sphi 0, %s69
    %s70 = sphi 0, %s67
    %s71 = sphi 0, %s70
    %s87 = sphi 0, %s71
    %s93 = sphi 0, %s95
    %s96 = sphi 0, %s93
    %s97 = sphi 0, %s96
    %s113 = sphi 0, %s97
  $region4: #{post_process_rss.1} parent=0 // loop_header_branch
    %13 = sbr.rel (%p11) target = $region8
  $region5: #{post_process_rss.1} parent=0 // loop_body
    %s15 = ssub.s32 %s10, 1
    %s16 = ssub.s32 %s10, 2
    %s17 = sadd.s32 %s10, 1
    %s19 = sadd.s32 %s18, 1
    %p22 = scmp.eq.s32.totalorder %s10, 1
    %p23 = scmp.ne.s32.totalorder %s18, %s20
    %p24 = scmp.eq.s32.totalorder %s10, 0
    %p25 = por %p23, %p24
    %p26 = scmp.ne.s32.totalorder %s18, %s20
    %p27 = scmp.eq.s32.totalorder %s15, 1
    %p28 = por %p26, %p27
    %p29 = scmp.ne.s32.totalorder %s20, %s21
    %p30 = scmp.eq.s32.totalorder %s15, 0
    %p31 = por %p29, %p30
    %p32 = scmp.ne.s32.totalorder %s20, %s21
    %p33 = scmp.eq.s32.totalorder %s16, 1
    %p34 = por %p32, %p33
    %p36 = scmp.ne.s32.totalorder %s21, %s35
    %p37 = scmp.eq.s32.totalorder %s16, 0
    %p38 = por %p36, %p37
    %s39 = ssub.s32 %s10, %s17
    %p40 = scmp.eq.s32.totalorder %s39, 0
    %s42 = sadd.s32 %s41, 1
    %s43 = scalar_select %p40, %s41, %s42
    %p46 = pneg %p40
    %p47 = scmp.eq.s32.totalorder %s10, 1
    %p48 = por %p46, %p47
    %p49 = scmp.ne.s32.totalorder %s41, %s44
    %p50 = scmp.eq.s32.totalorder %s10, 0
    %p51 = por %p49, %p50
    %p52 = scmp.ne.s32.totalorder %s41, %s44
    %p53 = scmp.eq.s32.totalorder %s15, 1
    %p54 = por %p52, %p53
    %p55 = scmp.ne.s32.totalorder %s44, %s45
    %p56 = scmp.eq.s32.totalorder %s15, 0
    %p57 = por %p55, %p56
    %p58 = scmp.ne.s32.totalorder %s44, %s45
    %p59 = scmp.eq.s32.totalorder %s16, 1
    %p60 = por %p58, %p59
    %p62 = scmp.ne.s32.totalorder %s45, %s61
    %p63 = scmp.eq.s32.totalorder %s16, 0
    %p64 = por %p62, %p63
    %s65 = ssub.s32 %s10, %s17
    %p66 = scmp.eq.s32.totalorder %s65, 0
    %s68 = sadd.s32 %s67, 1
    %s69 = scalar_select %p66, %s67, %s68
    %p72 = pneg %p66
    %p73 = scmp.eq.s32.totalorder %s10, 1
    %p74 = por %p72, %p73
    %p75 = scmp.ne.s32.totalorder %s67, %s70
    %p76 = scmp.eq.s32.totalorder %s10, 0
    %p77 = por %p75, %p76
    %p78 = scmp.ne.s32.totalorder %s67, %s70
    %p79 = scmp.eq.s32.totalorder %s15, 1
    %p80 = por %p78, %p79
    %p81 = scmp.ne.s32.totalorder %s70, %s71
    %p82 = scmp.eq.s32.totalorder %s15, 0
    %p83 = por %p81, %p82
    %p84 = scmp.ne.s32.totalorder %s70, %s71
    %p85 = scmp.eq.s32.totalorder %s16, 1
    %p86 = por %p84, %p85
    %p88 = scmp.ne.s32.totalorder %s71, %s87
    %p89 = scmp.eq.s32.totalorder %s16, 0
    %p90 = por %p88, %p89
    %s91 = ssub.s32 %s10, %s17
    %p92 = scmp.eq.s32.totalorder %s91, 0
    %s94 = sadd.s32 %s93, 1
    %s95 = scalar_select %p92, %s93, %s94
    %p98 = pneg %p92
    %p99 = scmp.eq.s32.totalorder %s10, 1
    %p100 = por %p98, %p99
    %p101 = scmp.ne.s32.totalorder %s93, %s96
    %p102 = scmp.eq.s32.totalorder %s10, 0
    %p103 = por %p101, %p102
    %p104 = scmp.ne.s32.totalorder %s93, %s96
    %p105 = scmp.eq.s32.totalorder %s15, 1
    %p106 = por %p104, %p105
    %p107 = scmp.ne.s32.totalorder %s96, %s97
    %p108 = scmp.eq.s32.totalorder %s15, 0
    %p109 = por %p107, %p108
    %p110 = scmp.ne.s32.totalorder %s96, %s97
    %p111 = scmp.eq.s32.totalorder %s16, 1
    %p112 = por %p110, %p111
    %p114 = scmp.ne.s32.totalorder %s97, %s113
    %p115 = scmp.eq.s32.totalorder %s16, 0
    %p116 = por %p114, %p115
    %p117 = scmp.le.s32.totalorder 1, %s10
    %p118 = scmp.lt.s32.totalorder %s10, 3
    %p119 = pnand %p117, %p118
    %p120 = pneg %p119
    // Predicated region
    $region9: #{post_process_rss.1} parent=5 // pred_check
      _
    $region10: #{post_process_rss.1} parent=5 // pred_check_branch
      %122 = sbr.rel (%p119) target = $region12
    $region11: #{post_process_rss.1} parent=5 // pred_region
      %s123 = ssub.s32 %s10, 1
      // Predicated region
      $region13: #{post_process_rss.1} parent=11 // pred_check
        %p124 = pneg %p31
      $region14: #{post_process_rss.1} parent=11 // pred_check_branch
        %126 = sbr.rel (%p124) target = $region16
      $region15: #{post_process_rss.1} parent=11 // pred_region
        _
      $region16: #{post_process_rss.1} parent=11 // pred_fallthru
        _
    $region12: #{post_process_rss.1} parent=5 // pred_fallthru
      _
    %p127 = scmp.lt.s32.totalorder %s10, 2
    // Predicated region
    $region17: #{post_process_rss.1} parent=5 // pred_check
      %p128 = pneg %p127
    $region18: #{post_process_rss.1} parent=5 // pred_check_branch
      %130 = sbr.rel (%p128) target = $region20
    $region19: #{post_process_rss.1} parent=5 // pred_region
      // Predicated region
      $region21: #{post_process_rss.1} parent=19 // pred_check
        %p131 = pneg %p51
      $region22: #{post_process_rss.1} parent=19 // pred_check_branch
        %133 = sbr.rel (%p131) target = $region24
      $region23: #{post_process_rss.1} parent=19 // pred_region
        %s134 = smul.u32 20, %s10
        %p135 = scmp.lt.s32.totalorder %s134, 39
        %s136 = scalar_select %p135, %s134, 39
        %s137 = smul.addr %s136, 3
        %s138 = smul.addr %s137, 8
        %s139 = scalar_lea.vmem %s1, %s138
        %s140 = smul.u32 20, %s10
      $region24: #{post_process_rss.1} parent=19 // pred_fallthru
        _
      // Predicated region
      $region25: #{post_process_rss.1} parent=19 // pred_check
        %p141 = pneg %p77
      $region26: #{post_process_rss.1} parent=19 // pred_check_branch
        %143 = sbr.rel (%p141) target = $region28
      $region27: #{post_process_rss.1} parent=19 // pred_region
        %s144 = smul.u32 20, %s10
        %p145 = scmp.lt.s32.totalorder %s144, 39
        %s146 = scalar_select %p145, %s144, 39
        %s147 = smul.addr %s146, 3
        %s148 = smul.addr %s147, 8
        %s149 = scalar_lea.vmem %s2, %s148
        %s150 = smul.u32 20, %s10
      $region28: #{post_process_rss.1} parent=19 // pred_fallthru
        _
    $region20: #{post_process_rss.1} parent=5 // pred_fallthru
      _
    %p151 = scmp.le.s32.totalorder 1, %s10
    %p152 = scmp.lt.s32.totalorder %s10, 3
    %p153 = pnand %p151, %p152
    %p154 = pneg %p153
    // Predicated region
    $region29: #{post_process_rss.1} parent=5 // pred_check
      _
    $region30: #{post_process_rss.1} parent=5 // pred_check_branch
      %156 = sbr.rel (%p153) target = $region32
    $region31: #{post_process_rss.1} parent=5 // pred_region
      %s157 = ssub.s32 %s10, 1
      %p158 = pneg %p31
      %p159 = pneg %p28
      %s160 = smul.u32 20, %s15
      %p161 = scmp.lt.s32.totalorder %s160, 39
      %s162 = scalar_select %p161, %s160, 39
      %s163 = smul.addr %s162, 3
      %s164 = smul.addr %s163, 8
      %s165 = scalar_lea.vmem %s1, %s164
      %p166 = pneg %p57
      %p167 = pneg %p54
      %s168 = smul.u32 20, %s15
      %p169 = scmp.lt.s32.totalorder %s168, 39
      %s170 = scalar_select %p169, %s168, 39
      %s171 = smul.addr %s170, 3
      %s172 = smul.addr %s171, 8
      %s173 = scalar_lea.vmem %s2, %s172
      %p174 = pneg %p83
      %p175 = pneg %p80
      %p176 = pneg %p109
      %p177 = pneg %p106
      %s178 = smul.u32 20, %s15
      %p179 = scmp.lt.s32.totalorder %s178, 39
      %s180 = scalar_select %p179, %s178, 39
      %s181 = smul.addr %s180, 3
      %s182 = smul.addr %s181, 8
      %s183 = scalar_lea.vmem %s3, %s182
      %s184 = smul.u32 20, %s15
      %p185 = scmp.lt.s32.totalorder %s184, 39
      %s186 = scalar_select %p185, %s184, 39
      %s187 = smul.addr %s186, 3
      %s188 = smul.addr %s187, 8
      %s189 = scalar_lea.vmem %s1, %s188
      %s190 = smul.u32 20, %s15
      %s191 = smul.u32 20, %s15
      %p192 = scmp.lt.s32.totalorder %s191, 39
      %s193 = scalar_select %p192, %s191, 39
      %s194 = smul.addr %s193, 3
      %s195 = smul.addr %s194, 8
      %s196 = scalar_lea.vmem %s2, %s195
      %s197 = smul.u32 20, %s15
      %s198 = smul.u32 20, %s15
      %p199 = scmp.lt.s32.totalorder %s198, 39
      %s200 = scalar_select %p199, %s198, 39
      %s201 = smul.addr %s200, 3
      %s202 = smul.addr %s201, 8
      %s203 = scalar_lea.vmem %s3, %s202
      %s204 = smul.u32 20, %s15
      %s205 = sld [smem:[#allocation2]]
      %v206 = vld [vmem:[%s189] sm:$0xff]
      %v207 = vld [vmem:[%s189 + $0x8] sm:$0xff]
      %v208 = vld [vmem:[%s189 + $0x10] sm:$0xff]
      %v209 = vld [vmem:[%s189 + $0x18] sm:$0xff]
      %v210 = vld [vmem:[%s189 + $0x20] sm:$0xff]
      %v211 = vld [vmem:[%s189 + $0x28] sm:$0xff]
      %v212 = vld [vmem:[%s189 + $0x30] sm:$0xff]
      %v213 = vld [vmem:[%s189 + $0x38] sm:$0xff]
      %v214 = vld [vmem:[%s189 + $0x40] sm:$0xff]
      %v215 = vld [vmem:[%s189 + $0x48] sm:$0xff]
      %v216 = vld [vmem:[%s189 + $0x50] sm:$0xff]
      %v217 = vld [vmem:[%s189 + $0x58] sm:$0xff]
      %v218 = vld [vmem:[%s189 + $0x60] sm:$0xff]
      %v219 = vld [vmem:[%s189 + $0x68] sm:$0xff]
      %v220 = vld [vmem:[%s189 + $0x70] sm:$0xff]
      %v221 = vld [vmem:[%s189 + $0x78] sm:$0xff]
      %v222 = vld [vmem:[%s189 + $0x80] sm:$0xff]
      %v223 = vld [vmem:[%s189 + $0x88] sm:$0xff]
      %v224 = vld [vmem:[%s189 + $0x90] sm:$0xff]
      %v225 = vld [vmem:[%s189 + $0x98] sm:$0xff]
      %v226 = vld [vmem:[%s189 + $0xa0] sm:$0xff]
      %v227 = vld [vmem:[%s189 + $0xa8] sm:$0xff]
      %v228 = vld [vmem:[%s189 + $0xb0] sm:$0xff]
      %v229 = vld [vmem:[%s189 + $0xb8] sm:$0xff]
      %v230 = vld [vmem:[%s189 + $0xc0] sm:$0xff]
      %v231 = vld [vmem:[%s189 + $0xc8] sm:$0xff]
      %v232 = vld [vmem:[%s189 + $0xd0] sm:$0xff]
      %v233 = vld [vmem:[%s189 + $0xd8] sm:$0xff]
      %v234 = vld [vmem:[%s189 + $0xe0] sm:$0xff]
      %v235 = vld [vmem:[%s189 + $0xe8] sm:$0xff]
      %v236 = vld [vmem:[%s189 + $0xf0] sm:$0xff]
      %v237 = vld [vmem:[%s189 + $0xf8] sm:$0xff]
      %v238 = vld [vmem:[%s189 + $0x100] sm:$0xff]
      %v239 = vld [vmem:[%s189 + $0x108] sm:$0xff]
      %v240 = vld [vmem:[%s189 + $0x110] sm:$0xff]
      %v241 = vld [vmem:[%s189 + $0x118] sm:$0xff]
      %v242 = vld [vmem:[%s189 + $0x120] sm:$0xff]
      %v243 = vld [vmem:[%s189 + $0x128] sm:$0xff]
      %v244 = vld [vmem:[%s189 + $0x130] sm:$0xff]
      %v245 = vld [vmem:[%s189 + $0x138] sm:$0xff]
      %v246 = vld [vmem:[%s189 + $0x140] sm:$0xff]
      %v247 = vld [vmem:[%s189 + $0x148] sm:$0xff]
      %v248 = vld [vmem:[%s189 + $0x150] sm:$0xff]
      %v249 = vld [vmem:[%s189 + $0x158] sm:$0xff]
      %v250 = vld [vmem:[%s189 + $0x160] sm:$0xff]
      %v251 = vld [vmem:[%s189 + $0x168] sm:$0xff]
      %v252 = vld [vmem:[%s189 + $0x170] sm:$0xff]
      %v253 = vld [vmem:[%s189 + $0x178] sm:$0xff]
      %v254 = vld [vmem:[%s189 + $0x180] sm:$0xff]
      %v255 = vld [vmem:[%s189 + $0x188] sm:$0xff]
      %v256 = vld [vmem:[%s189 + $0x190] sm:$0xff]
      %v257 = vld [vmem:[%s189 + $0x198] sm:$0xff]
      %v258 = vld [vmem:[%s189 + $0x1a0] sm:$0xff]
      %v259 = vld [vmem:[%s189 + $0x1a8] sm:$0xff]
      %v260 = vld [vmem:[%s189 + $0x1b0] sm:$0xff]
      %v261 = vld [vmem:[%s189 + $0x1b8] sm:$0xff]
      %v262 = vld [vmem:[%s189 + $0x1c0] sm:$0xff]
      %v263 = vld [vmem:[%s189 + $0x1c8] sm:$0xff]
      %v264 = vld [vmem:[%s189 + $0x1d0] sm:$0xff]
      %v265 = vld [vmem:[%s189 + $0x1d8] sm:$0xff]
      %v266 = vld [vmem:[%s196] sm:$0xff]
      %v267 = vld [vmem:[%s196 + $0x8] sm:$0xff]
      %v268 = vld [vmem:[%s196 + $0x10] sm:$0xff]
      %v269 = vld [vmem:[%s196 + $0x18] sm:$0xff]
      %v270 = vld [vmem:[%s196 + $0x20] sm:$0xff]
      %v271 = vld [vmem:[%s196 + $0x28] sm:$0xff]
      %v272 = vld [vmem:[%s196 + $0x30] sm:$0xff]
      %v273 = vld [vmem:[%s196 + $0x38] sm:$0xff]
      %v274 = vld [vmem:[%s196 + $0x40] sm:$0xff]
      %v275 = vld [vmem:[%s196 + $0x48] sm:$0xff]
      %v276 = vld [vmem:[%s196 + $0x50] sm:$0xff]
      %v277 = vld [vmem:[%s196 + $0x58] sm:$0xff]
      %v278 = vld [vmem:[%s196 + $0x60] sm:$0xff]
      %v279 = vld [vmem:[%s196 + $0x68] sm:$0xff]
      %v280 = vld [vmem:[%s196 + $0x70] sm:$0xff]
      %v281 = vld [vmem:[%s196 + $0x78] sm:$0xff]
      %v282 = vld [vmem:[%s196 + $0x80] sm:$0xff]
      %v283 = vld [vmem:[%s196 + $0x88] sm:$0xff]
      %v284 = vld [vmem:[%s196 + $0x90] sm:$0xff]
      %v285 = vld [vmem:[%s196 + $0x98] sm:$0xff]
      %v286 = vld [vmem:[%s196 + $0xa0] sm:$0xff]
      %v287 = vld [vmem:[%s196 + $0xa8] sm:$0xff]
      %v288 = vld [vmem:[%s196 + $0xb0] sm:$0xff]
      %v289 = vld [vmem:[%s196 + $0xb8] sm:$0xff]
      %v290 = vld [vmem:[%s196 + $0xc0] sm:$0xff]
      %v291 = vld [vmem:[%s196 + $0xc8] sm:$0xff]
      %v292 = vld [vmem:[%s196 + $0xd0] sm:$0xff]
      %v293 = vld [vmem:[%s196 + $0xd8] sm:$0xff]
      %v294 = vld [vmem:[%s196 + $0xe0] sm:$0xff]
      %v295 = vld [vmem:[%s196 + $0xe8] sm:$0xff]
      %v296 = vld [vmem:[%s196 + $0xf0] sm:$0xff]
      %v297 = vld [vmem:[%s196 + $0xf8] sm:$0xff]
      %v298 = vld [vmem:[%s196 + $0x100] sm:$0xff]
      %v299 = vld [vmem:[%s196 + $0x108] sm:$0xff]
      %v300 = vld [vmem:[%s196 + $0x110] sm:$0xff]
      %v301 = vld [vmem:[%s196 + $0x118] sm:$0xff]
      %v302 = vld [vmem:[%s196 + $0x120] sm:$0xff]
      %v303 = vld [vmem:[%s196 + $0x128] sm:$0xff]
      %v304 = vld [vmem:[%s196 + $0x130] sm:$0xff]
      %v305 = vld [vmem:[%s196 + $0x138] sm:$0xff]
      %v306 = vld [vmem:[%s196 + $0x140] sm:$0xff]
      %v307 = vld [vmem:[%s196 + $0x148] sm:$0xff]
      %v308 = vld [vmem:[%s196 + $0x150] sm:$0xff]
      %v309 = vld [vmem:[%s196 + $0x158] sm:$0xff]
      %v310 = vld [vmem:[%s196 + $0x160] sm:$0xff]
      %v311 = vld [vmem:[%s196 + $0x168] sm:$0xff]
      %v312 = vld [vmem:[%s196 + $0x170] sm:$0xff]
      %v313 = vld [vmem:[%s196 + $0x178] sm:$0xff]
      %v314 = vld [vmem:[%s196 + $0x180] sm:$0xff]
      %v315 = vld [vmem:[%s196 + $0x188] sm:$0xff]
      %v316 = vld [vmem:[%s196 + $0x190] sm:$0xff]
      %v317 = vld [vmem:[%s196 + $0x198] sm:$0xff]
      %v318 = vld [vmem:[%s196 + $0x1a0] sm:$0xff]
      %v319 = vld [vmem:[%s196 + $0x1a8] sm:$0xff]
      %v320 = vld [vmem:[%s196 + $0x1b0] sm:$0xff]
      %v321 = vld [vmem:[%s196 + $0x1b8] sm:$0xff]
      %v322 = vld [vmem:[%s196 + $0x1c0] sm:$0xff]
      %v323 = vld [vmem:[%s196 + $0x1c8] sm:$0xff]
      %v324 = vld [vmem:[%s196 + $0x1d0] sm:$0xff]
      %v325 = vld [vmem:[%s196 + $0x1d8] sm:$0xff]
      %v326 = vadd.f32 %v206, %v266
      %v327 = vadd.f32 %v207, %v267
      %v328 = vadd.f32 %v208, %v268
      %v329 = vadd.f32 %v209, %v269
      %v330 = vadd.f32 %v210, %v270
      %v331 = vadd.f32 %v211, %v271
      %v332 = vadd.f32 %v212, %v272
      %v333 = vadd.f32 %v213, %v273
      %v334 = vadd.f32 %v214, %v274
      %v335 = vadd.f32 %v215, %v275
      %v336 = vadd.f32 %v216, %v276
      %v337 = vadd.f32 %v217, %v277
      %v338 = vadd.f32 %v218, %v278
      %v339 = vadd.f32 %v219, %v279
      %v340 = vadd.f32 %v220, %v280
      %v341 = vadd.f32 %v221, %v281
      %v342 = vadd.f32 %v222, %v282
      %v343 = vadd.f32 %v223, %v283
      %v344 = vadd.f32 %v224, %v284
      %v345 = vadd.f32 %v225, %v285
      %v346 = vadd.f32 %v226, %v286
      %v347 = vadd.f32 %v227, %v287
      %v348 = vadd.f32 %v228, %v288
      %v349 = vadd.f32 %v229, %v289
      %v350 = vadd.f32 %v230, %v290
      %v351 = vadd.f32 %v231, %v291
      %v352 = vadd.f32 %v232, %v292
      %v353 = vadd.f32 %v233, %v293
      %v354 = vadd.f32 %v234, %v294
      %v355 = vadd.f32 %v235, %v295
      %v356 = vadd.f32 %v236, %v296
      %v357 = vadd.f32 %v237, %v297
      %v358 = vadd.f32 %v238, %v298
      %v359 = vadd.f32 %v239, %v299
      %v360 = vadd.f32 %v240, %v300
      %v361 = vadd.f32 %v241, %v301
      %v362 = vadd.f32 %v242, %v302
      %v363 = vadd.f32 %v243, %v303
      %v364 = vadd.f32 %v244, %v304
      %v365 = vadd.f32 %v245, %v305
      %v366 = vadd.f32 %v246, %v306
      %v367 = vadd.f32 %v247, %v307
      %v368 = vadd.f32 %v248, %v308
      %v369 = vadd.f32 %v249, %v309
      %v370 = vadd.f32 %v250, %v310
      %v371 = vadd.f32 %v251, %v311
      %v372 = vadd.f32 %v252, %v312
      %v373 = vadd.f32 %v253, %v313
      %v374 = vadd.f32 %v254, %v314
      %v375 = vadd.f32 %v255, %v315
      %v376 = vadd.f32 %v256, %v316
      %v377 = vadd.f32 %v257, %v317
      %v378 = vadd.f32 %v258, %v318
      %v379 = vadd.f32 %v259, %v319
      %v380 = vadd.f32 %v260, %v320
      %v381 = vadd.f32 %v261, %v321
      %v382 = vadd.f32 %v262, %v322
      %v383 = vadd.f32 %v263, %v323
      %v384 = vadd.f32 %v264, %v324
      %v385 = vadd.f32 %v265, %v325
      %v386 = vstv %s205
      %v387 = vmul.f32 %v326, %v386
      %v388 = vmul.f32 %v327, %v386
      %v389 = vmul.f32 %v328, %v386
      %v390 = vmul.f32 %v329, %v386
      %v391 = vmul.f32 %v330, %v386
      %v392 = vmul.f32 %v331, %v386
      %v393 = vmul.f32 %v332, %v386
      %v394 = vmul.f32 %v333, %v386
      %v395 = vmul.f32 %v334, %v386
      %v396 = vmul.f32 %v335, %v386
      %v397 = vmul.f32 %v336, %v386
      %v398 = vmul.f32 %v337, %v386
      %v399 = vmul.f32 %v338, %v386
      %v400 = vmul.f32 %v339, %v386
      %v401 = vmul.f32 %v340, %v386
      %v402 = vmul.f32 %v341, %v386
      %v403 = vmul.f32 %v342, %v386
      %v404 = vmul.f32 %v343, %v386
      %v405 = vmul.f32 %v344, %v386
      %v406 = vmul.f32 %v345, %v386
      %v407 = vmul.f32 %v346, %v386
      %v408 = vmul.f32 %v347, %v386
      %v409 = vmul.f32 %v348, %v386
      %v410 = vmul.f32 %v349, %v386
      %v411 = vmul.f32 %v350, %v386
      %v412 = vmul.f32 %v351, %v386
      %v413 = vmul.f32 %v352, %v386
      %v414 = vmul.f32 %v353, %v386
      %v415 = vmul.f32 %v354, %v386
      %v416 = vmul.f32 %v355, %v386
      %v417 = vmul.f32 %v356, %v386
      %v418 = vmul.f32 %v357, %v386
      %v419 = vmul.f32 %v358, %v386
      %v420 = vmul.f32 %v359, %v386
      %v421 = vmul.f32 %v360, %v386
      %v422 = vmul.f32 %v361, %v386
      %v423 = vmul.f32 %v362, %v386
      %v424 = vmul.f32 %v363, %v386
      %v425 = vmul.f32 %v364, %v386
      %v426 = vmul.f32 %v365, %v386
      %v427 = vmul.f32 %v366, %v386
      %v428 = vmul.f32 %v367, %v386
      %v429 = vmul.f32 %v368, %v386
      %v430 = vmul.f32 %v369, %v386
      %v431 = vmul.f32 %v370, %v386
      %v432 = vmul.f32 %v371, %v386
      %v433 = vmul.f32 %v372, %v386
      %v434 = vmul.f32 %v373, %v386
      %v435 = vmul.f32 %v374, %v386
      %v436 = vmul.f32 %v375, %v386
      %v437 = vmul.f32 %v376, %v386
      %v438 = vmul.f32 %v377, %v386
      %v439 = vmul.f32 %v378, %v386
      %v440 = vmul.f32 %v379, %v386
      %v441 = vmul.f32 %v380, %v386
      %v442 = vmul.f32 %v381, %v386
      %v443 = vmul.f32 %v382, %v386
      %v444 = vmul.f32 %v383, %v386
      %v445 = vmul.f32 %v384, %v386
      %v446 = vmul.f32 %v385, %v386
      %447 = vst [vmem:[%s203] sm:$0xff] %v387
      %448 = vst [vmem:[%s203 + $0x8] sm:$0xff] %v388
      %449 = vst [vmem:[%s203 + $0x10] sm:$0xff] %v389
      %450 = vst [vmem:[%s203 + $0x18] sm:$0xff] %v390
      %451 = vst [vmem:[%s203 + $0x20] sm:$0xff] %v391
      %452 = vst [vmem:[%s203 + $0x28] sm:$0xff] %v392
      %453 = vst [vmem:[%s203 + $0x30] sm:$0xff] %v393
      %454 = vst [vmem:[%s203 + $0x38] sm:$0xff] %v394
      %455 = vst [vmem:[%s203 + $0x40] sm:$0xff] %v395
      %456 = vst [vmem:[%s203 + $0x48] sm:$0xff] %v396
      %457 = vst [vmem:[%s203 + $0x50] sm:$0xff] %v397
      %458 = vst [vmem:[%s203 + $0x58] sm:$0xff] %v398
      %459 = vst [vmem:[%s203 + $0x60] sm:$0xff] %v399
      %460 = vst [vmem:[%s203 + $0x68] sm:$0xff] %v400
      %461 = vst [vmem:[%s203 + $0x70] sm:$0xff] %v401
      %462 = vst [vmem:[%s203 + $0x78] sm:$0xff] %v402
      %463 = vst [vmem:[%s203 + $0x80] sm:$0xff] %v403
      %464 = vst [vmem:[%s203 + $0x88] sm:$0xff] %v404
      %465 = vst [vmem:[%s203 + $0x90] sm:$0xff] %v405
      %466 = vst [vmem:[%s203 + $0x98] sm:$0xff] %v406
      %467 = vst [vmem:[%s203 + $0xa0] sm:$0xff] %v407
      %468 = vst [vmem:[%s203 + $0xa8] sm:$0xff] %v408
      %469 = vst [vmem:[%s203 + $0xb0] sm:$0xff] %v409
      %470 = vst [vmem:[%s203 + $0xb8] sm:$0xff] %v410
      %471 = vst [vmem:[%s203 + $0xc0] sm:$0xff] %v411
      %472 = vst [vmem:[%s203 + $0xc8] sm:$0xff] %v412
      %473 = vst [vmem:[%s203 + $0xd0] sm:$0xff] %v413
      %474 = vst [vmem:[%s203 + $0xd8] sm:$0xff] %v414
      %475 = vst [vmem:[%s203 + $0xe0] sm:$0xff] %v415
      %476 = vst [vmem:[%s203 + $0xe8] sm:$0xff] %v416
      %477 = vst [vmem:[%s203 + $0xf0] sm:$0xff] %v417
      %478 = vst [vmem:[%s203 + $0xf8] sm:$0xff] %v418
      %479 = vst [vmem:[%s203 + $0x100] sm:$0xff] %v419
      %480 = vst [vmem:[%s203 + $0x108] sm:$0xff] %v420
      %481 = vst [vmem:[%s203 + $0x110] sm:$0xff] %v421
      %482 = vst [vmem:[%s203 + $0x118] sm:$0xff] %v422
      %483 = vst [vmem:[%s203 + $0x120] sm:$0xff] %v423
      %484 = vst [vmem:[%s203 + $0x128] sm:$0xff] %v424
      %485 = vst [vmem:[%s203 + $0x130] sm:$0xff] %v425
      %486 = vst [vmem:[%s203 + $0x138] sm:$0xff] %v426
      %487 = vst [vmem:[%s203 + $0x140] sm:$0xff] %v427
      %488 = vst [vmem:[%s203 + $0x148] sm:$0xff] %v428
      %489 = vst [vmem:[%s203 + $0x150] sm:$0xff] %v429
      %490 = vst [vmem:[%s203 + $0x158] sm:$0xff] %v430
      %491 = vst [vmem:[%s203 + $0x160] sm:$0xff] %v431
      %492 = vst [vmem:[%s203 + $0x168] sm:$0xff] %v432
      %493 = vst [vmem:[%s203 + $0x170] sm:$0xff] %v433
      %494 = vst [vmem:[%s203 + $0x178] sm:$0xff] %v434
      %495 = vst [vmem:[%s203 + $0x180] sm:$0xff] %v435
      %496 = vst [vmem:[%s203 + $0x188] sm:$0xff] %v436
      %497 = vst [vmem:[%s203 + $0x190] sm:$0xff] %v437
      %498 = vst [vmem:[%s203 + $0x198] sm:$0xff] %v438
      %499 = vst [vmem:[%s203 + $0x1a0] sm:$0xff] %v439
      %500 = vst [vmem:[%s203 + $0x1a8] sm:$0xff] %v440
      %501 = vst [vmem:[%s203 + $0x1b0] sm:$0xff] %v441
      %502 = vst [vmem:[%s203 + $0x1b8] sm:$0xff] %v442
      %503 = vst [vmem:[%s203 + $0x1c0] sm:$0xff] %v443
      %504 = vst [vmem:[%s203 + $0x1c8] sm:$0xff] %v444
      %505 = vst [vmem:[%s203 + $0x1d0] sm:$0xff] %v445
      %506 = vst [vmem:[%s203 + $0x1d8] sm:$0xff] %v446
      %s507 = smul.u32 20, %s15
      %p508 = scmp.lt.s32.totalorder %s507, 39
      %s509 = scalar_select %p508, %s507, 39
      %s510 = smul.addr %s509, 3
      %s511 = smul.addr %s510, 8
      %s512 = scalar_lea.vmem %s3, %s511
      // Predicated region
      $region33: #{post_process_rss.1} parent=31 // pred_check
        %p513 = pneg %p106
      $region34: #{post_process_rss.1} parent=31 // pred_check_branch
        %515 = sbr.rel (%p513) target = $region36
      $region35: #{post_process_rss.1} parent=31 // pred_region
        %s516 = smul.u32 20, %s15
      $region36: #{post_process_rss.1} parent=31 // pred_fallthru
        _
    $region32: #{post_process_rss.1} parent=5 // pred_fallthru
      _
    %p517 = scmp.le.s32.totalorder 2, %s10
    // Predicated region
    $region37: #{post_process_rss.1} parent=5 // pred_check
      %p518 = pneg %p517
    $region38: #{post_process_rss.1} parent=5 // pred_check_branch
      %520 = sbr.rel (%p518) target = $region40
    $region39: #{post_process_rss.1} parent=5 // pred_region
      %s521 = ssub.s32 %s10, 2
      // Predicated region
      $region41: #{post_process_rss.1} parent=39 // pred_check
        %p522 = pneg %p112
      $region42: #{post_process_rss.1} parent=39 // pred_check_branch
        %524 = sbr.rel (%p522) target = $region44
      $region43: #{post_process_rss.1} parent=39 // pred_region
        %s525 = smul.u32 20, %s16
        %p526 = scmp.lt.s32.totalorder %s525, 39
        %s527 = scalar_select %p526, %s525, 39
        %s528 = smul.addr %s527, 3
        %s529 = smul.addr %s528, 8
        %s530 = scalar_lea.vmem %s3, %s529
      $region44: #{post_process_rss.1} parent=39 // pred_fallthru
        _
    $region40: #{post_process_rss.1} parent=5 // pred_fallthru
      _
  $region6: #{post_process_rss.1} parent=0 // loop_footer
    %s14 = sadd.s32 1, %s10
  $region7: #{post_process_rss.1} parent=0 // loop_footer_branch
    %9 = sbr.rel target = $region3
  $region8: #{post_process_rss.1} parent=0 // loop_exit
    _

</llo_original>
